<compile_context>
chip_gen: v7x
topology: tpu7x:2x2x1
jax: 0.10.0
libtpu: 0.0.40
codegen_flags: <defaults>
</compile_context>

<pallas_src>
import jax
import jax.numpy as jnp
from jax.experimental import pallas as pl
from jax.experimental.pallas import tpu as pltpu

H_IN, W_IN = 5, 64          # implied by the hard-coded narrow() args
H_PAD, W_PAD = 2, 16
H_OUT, W_OUT = H_IN + 2 * H_PAD, W_IN + 2 * W_PAD   # 9, 96
LANES_IN = H_IN * W_IN                               # 320
LANES_OUT = H_OUT * W_OUT                            # 864

# Output row d of the 9x96 plane reads input row ROW_SRC[d] of the 5x64 plane:
# rows [3,4] (top wrap), rows [0..4] (center), rows [0,1] (bottom wrap).
ROW_SRC = (3, 4, 0, 1, 2, 3, 4, 0, 1)


def circular_pad_kernel(x_ref, o_ref):
    """x_ref: (t, 320) flattened 5x64 planes; o_ref: (t, 864) flattened 9x96.

    The lane mapping is identical for every plane (sublane), so the whole pad
    is 27 static lane-range copies; they are assembled into one (t, 864) value
    and written with a single lane-dense store.  Column layout per output row:
      [0:16)  <- input cols [48:64)
      [16:80) <- input cols [0:64)
      [80:96) <- input cols [0:16)
    """
    x = x_ref[...]
    pieces = []
    for s in ROW_SRC:
        row = x[:, s * W_IN:(s + 1) * W_IN]          # (t, 64) input row s
        pieces.append(row[:, W_IN - W_PAD:])         # left wrap  (t, 16)
        pieces.append(row)                           # center     (t, 64)
        pieces.append(row[:, :W_PAD])                # right wrap (t, 16)
    o_ref[...] = jnp.concatenate(pieces, axis=-1)    # (t, 864), every elem once


def _round_up(n, m):
    return -(-n // m) * m


def _planes_per_block(planes, itemsize, max_block_bytes, min_grid_steps):
    """Planes per grid step: as large as the VMEM budget allows, sublane-dense,
    but small enough that the grid has >= min_grid_steps steps (v7x megacore).

    Result is either == planes (block equals full array extent) or a multiple
    of the dtype's sublane packing, so the (8,128) block constraint holds.
    """
    sub = 8 * max(1, 4 // itemsize)           # sublane packing: 8 f32 / 16 bf16 / 32 i8
    in_lanes = _round_up(LANES_IN, 128)       # 384
    out_lanes = _round_up(LANES_OUT, 128)     # 896
    # Double-buffered input + output blocks plus the staged output value.
    per_plane = (2 * (in_lanes + out_lanes) + out_lanes) * itemsize
    vmem_cap = max(sub, max_block_bytes // per_plane)
    steps_cap = max(pl.cdiv(planes, min_grid_steps), sub)
    t = min(planes, vmem_cap, steps_cap)
    if t < planes and t > sub:
        t = (t // sub) * sub                  # keep tiled blocks sublane-dense
    return max(1, t)


def circular_pad(x, *, max_block_bytes=8 * 1024 * 1024, min_grid_steps=4):
    """Pallas CircularPad.forward for NCHW input (N, C, 5, 64) -> (N, C, 9, 96)."""
    N, C, H, W = x.shape
    assert H == H_IN and W == W_IN, "CircularPad hard-codes H=5, W=64"
    planes = N * C
    itemsize = jnp.dtype(x.dtype).itemsize
    t = _planes_per_block(planes, itemsize, max_block_bytes, min_grid_steps)
    grid = (pl.cdiv(planes, t),)              # ragged last block masked by Pallas

    # Collapse N*C*H*W -> (planes, lanes): free contiguous reshape for NCHW.
    x2 = x.reshape(planes, LANES_IN)

    out = pl.pallas_call(
        circular_pad_kernel,
        out_shape=jax.ShapeDtypeStruct((planes, LANES_OUT), x.dtype),
        grid_spec=pl.GridSpec(
            grid=grid,
            in_specs=[pl.BlockSpec((t, LANES_IN), lambda i: (i, 0))],
            out_specs=pl.BlockSpec((t, LANES_OUT), lambda i: (i, 0)),
        ),
        compiler_params=pltpu.CompilerParams(
            dimension_semantics=("parallel",),
            # Default 8 MiB block budget fits every generation's scoped-VMEM
            # default (16/32/32 MiB); only raise the ceiling when the caller
            # raises the budget.  Keep blocks <= ~24 MiB on v7x (64 MiB VMEM).
            vmem_limit_bytes=(2 * max_block_bytes
                              if max_block_bytes > 8 * 1024 * 1024 else None),
        ),
    )(x2)
    return out.reshape(N, C, H_OUT, W_OUT)


def circular_pad_ref(x):
    """Pure-JAX reference mirroring the torch.narrow/cat semantics exactly."""
    x = jnp.concatenate([x[:, :, 3:3 + 2], x, x[:, :, 0:2]], axis=2)
    x = jnp.concatenate([x[:, :, :, 48:48 + 16], x, x[:, :, :, 0:16]], axis=3)
    return x


if __name__ == "__main__":
    key = jax.random.PRNGKey(0)
    k1, k2, k3, k4 = jax.random.split(key, 4)

    # 1) Small shape from the module: batch=2, channels=4, 5x64 electrode grid.
    x = jax.random.normal(k1, (2, 4, H_IN, W_IN), dtype=jnp.float32)
    out = jax.block_until_ready(circular_pad(x))
    assert out.shape == (2, 4, H_OUT, W_OUT), out.shape
    assert out.dtype == x.dtype
    assert jnp.array_equal(out, circular_pad_ref(x)), "mismatch (single block)"

    # 2) Multi-block grid (block size divides planes evenly).
    x2 = jax.random.normal(k2, (4, 16, H_IN, W_IN), dtype=jnp.float32)
    out2 = jax.block_until_ready(circular_pad(x2, max_block_bytes=256 * 1024))
    assert jnp.array_equal(out2, circular_pad_ref(x2)), "mismatch (tiled grid)"

    # 3) Ragged last block: N*C = 21 planes is not a multiple of the block size.
    x3 = jax.random.normal(k3, (3, 7, H_IN, W_IN), dtype=jnp.float32)
    out3 = jax.block_until_ready(circular_pad(x3))
    assert jnp.array_equal(out3, circular_pad_ref(x3)), "mismatch (ragged grid)"

    # 4) bf16 path (sublane packing = 16), previously untested.
    x4 = jax.random.normal(k4, (2, 8, H_IN, W_IN), dtype=jnp.float32).astype(jnp.bfloat16)
    out4 = jax.block_until_ready(circular_pad(x4))
    assert out4.dtype == jnp.bfloat16
    assert jnp.array_equal(out4, circular_pad_ref(x4)), "mismatch (bf16)"

    print("KERNEL_OK")
</pallas_src>

<mosaic_0001>
module attributes {stable_mosaic.version = 11 : i64} {
  func.func @circular_pad_kernel(%arg0: i32, %arg1: memref<8x320xf32, #tpu.memory_space<vmem>>, %arg2: memref<8x864xf32, #tpu.memory_space<vmem>>) attributes {dimension_semantics = [#tpu.dimension_semantics<parallel>], iteration_bounds = array<i64: 1>, scalar_prefetch = 0 : i64, scratch_operands = 0 : i64, tpu.core_type = #tpu.core_type<tc>, window_params = [{transform_indices = @transform_0, window_bounds = array<i64: 8, 320>}, {transform_indices = @transform_1, window_bounds = array<i64: 8, 864>}]} {
    %c0 = arith.constant 0 : index
    %c0_0 = arith.constant 0 : index
    %0 = vector.load %arg1[%c0, %c0_0] : memref<8x320xf32, #tpu.memory_space<vmem>>, vector<8x320xf32>
    %1 = vector.extract_strided_slice %0 {offsets = [0, 192], sizes = [8, 64], strides = [1, 1]} : vector<8x320xf32> to vector<8x64xf32>
    %2 = vector.extract_strided_slice %1 {offsets = [0, 48], sizes = [8, 16], strides = [1, 1]} : vector<8x64xf32> to vector<8x16xf32>
    %3 = vector.extract_strided_slice %1 {offsets = [0, 0], sizes = [8, 16], strides = [1, 1]} : vector<8x64xf32> to vector<8x16xf32>
    %4 = vector.extract_strided_slice %0 {offsets = [0, 256], sizes = [8, 64], strides = [1, 1]} : vector<8x320xf32> to vector<8x64xf32>
    %5 = vector.extract_strided_slice %4 {offsets = [0, 48], sizes = [8, 16], strides = [1, 1]} : vector<8x64xf32> to vector<8x16xf32>
    %6 = vector.extract_strided_slice %4 {offsets = [0, 0], sizes = [8, 16], strides = [1, 1]} : vector<8x64xf32> to vector<8x16xf32>
    %7 = vector.extract_strided_slice %0 {offsets = [0, 0], sizes = [8, 64], strides = [1, 1]} : vector<8x320xf32> to vector<8x64xf32>
    %8 = vector.extract_strided_slice %7 {offsets = [0, 48], sizes = [8, 16], strides = [1, 1]} : vector<8x64xf32> to vector<8x16xf32>
    %9 = vector.extract_strided_slice %7 {offsets = [0, 0], sizes = [8, 16], strides = [1, 1]} : vector<8x64xf32> to vector<8x16xf32>
    %10 = vector.extract_strided_slice %0 {offsets = [0, 64], sizes = [8, 64], strides = [1, 1]} : vector<8x320xf32> to vector<8x64xf32>
    %11 = vector.extract_strided_slice %10 {offsets = [0, 48], sizes = [8, 16], strides = [1, 1]} : vector<8x64xf32> to vector<8x16xf32>
    %12 = vector.extract_strided_slice %10 {offsets = [0, 0], sizes = [8, 16], strides = [1, 1]} : vector<8x64xf32> to vector<8x16xf32>
    %13 = vector.extract_strided_slice %0 {offsets = [0, 128], sizes = [8, 64], strides = [1, 1]} : vector<8x320xf32> to vector<8x64xf32>
    %14 = vector.extract_strided_slice %13 {offsets = [0, 48], sizes = [8, 16], strides = [1, 1]} : vector<8x64xf32> to vector<8x16xf32>
    %15 = vector.extract_strided_slice %13 {offsets = [0, 0], sizes = [8, 16], strides = [1, 1]} : vector<8x64xf32> to vector<8x16xf32>
    %16 = vector.extract_strided_slice %0 {offsets = [0, 192], sizes = [8, 64], strides = [1, 1]} : vector<8x320xf32> to vector<8x64xf32>
    %17 = vector.extract_strided_slice %16 {offsets = [0, 48], sizes = [8, 16], strides = [1, 1]} : vector<8x64xf32> to vector<8x16xf32>
    %18 = vector.extract_strided_slice %16 {offsets = [0, 0], sizes = [8, 16], strides = [1, 1]} : vector<8x64xf32> to vector<8x16xf32>
    %19 = vector.extract_strided_slice %0 {offsets = [0, 256], sizes = [8, 64], strides = [1, 1]} : vector<8x320xf32> to vector<8x64xf32>
    %20 = vector.extract_strided_slice %19 {offsets = [0, 48], sizes = [8, 16], strides = [1, 1]} : vector<8x64xf32> to vector<8x16xf32>
    %21 = vector.extract_strided_slice %19 {offsets = [0, 0], sizes = [8, 16], strides = [1, 1]} : vector<8x64xf32> to vector<8x16xf32>
    %22 = vector.extract_strided_slice %0 {offsets = [0, 0], sizes = [8, 64], strides = [1, 1]} : vector<8x320xf32> to vector<8x64xf32>
    %23 = vector.extract_strided_slice %22 {offsets = [0, 48], sizes = [8, 16], strides = [1, 1]} : vector<8x64xf32> to vector<8x16xf32>
    %24 = vector.extract_strided_slice %22 {offsets = [0, 0], sizes = [8, 16], strides = [1, 1]} : vector<8x64xf32> to vector<8x16xf32>
    %25 = vector.extract_strided_slice %0 {offsets = [0, 64], sizes = [8, 64], strides = [1, 1]} : vector<8x320xf32> to vector<8x64xf32>
    %26 = vector.extract_strided_slice %25 {offsets = [0, 48], sizes = [8, 16], strides = [1, 1]} : vector<8x64xf32> to vector<8x16xf32>
    %27 = vector.extract_strided_slice %25 {offsets = [0, 0], sizes = [8, 16], strides = [1, 1]} : vector<8x64xf32> to vector<8x16xf32>
    %28 = tpu.concatenate %2, %1, %3, %5, %4, %6, %8, %7, %9, %11, %10, %12, %14, %13, %15, %17 in 1 : vector<8x16xf32>, vector<8x64xf32>, vector<8x16xf32>, vector<8x16xf32>, vector<8x64xf32>, vector<8x16xf32>, vector<8x16xf32>, vector<8x64xf32>, vector<8x16xf32>, vector<8x16xf32>, vector<8x64xf32>, vector<8x16xf32>, vector<8x16xf32>, vector<8x64xf32>, vector<8x16xf32>, vector<8x16xf32> -> vector<8x496xf32>
    %29 = tpu.concatenate %16, %18, %20, %19, %21, %23, %22, %24, %26, %25, %27 in 1 : vector<8x64xf32>, vector<8x16xf32>, vector<8x16xf32>, vector<8x64xf32>, vector<8x16xf32>, vector<8x16xf32>, vector<8x64xf32>, vector<8x16xf32>, vector<8x16xf32>, vector<8x64xf32>, vector<8x16xf32> -> vector<8x368xf32>
    %30 = tpu.concatenate %28, %29 in 1 : vector<8x496xf32>, vector<8x368xf32> -> vector<8x864xf32>
    %c0_1 = arith.constant 0 : index
    %c0_2 = arith.constant 0 : index
    %31 = vector.load %arg2[%c0_1, %c0_2] : memref<8x864xf32, #tpu.memory_space<vmem>>, vector<8x864xf32>
    tpu.vector_store %arg2[%c0_1, %c0_2], %30 {strides = array<i32>} : memref<8x864xf32, #tpu.memory_space<vmem>>, vector<8x864xf32>,
    return
  }
  func.func @transform_0(%arg0: i32) -> (i32, i32) {
    %c0_i32 = arith.constant 0 : i32
    %c0_i32_0 = arith.constant 0 : i32
    return %arg0, %c0_i32 : i32, i32
  }
  func.func @transform_1(%arg0: i32) -> (i32, i32) {
    %c0_i32 = arith.constant 0 : i32
    %c0_i32_0 = arith.constant 0 : i32
    return %arg0, %c0_i32 : i32, i32
  }
}

</mosaic_0001>

<llo_original>
// kernel: tpu_custom_call.1
$region0: #{tpu_custom_call.1}
  #allocation0 [shape = 'u32[]', space=smem, size = 0x4, offset = 0x4, fixed_abs, tag = 'smem constant byte address 0x4 - core index']
  #allocation1 [shape = 'u32[144,128]{1,0:T(1,128)}', space=vmem, size = 0x12000, scoped, tag = 'internal scratch']
  %s0 = inlined_call_operand.hbm [shape: f32[8,320], index: 0, kind: input, shape index: {}]
  %s1 = inlined_call_operand.hbm [shape: f32[8,864], index: 1, kind: output, shape index: {}]
  %s2 = sld [smem:[#allocation0]]
  $region18: #{tpu_custom_call.1} parent=0
    _
  %s4 = ssub.s32 1, %s2
  %s5 = scalar_select 0, %s4, %s2
  $region1: #{tpu_custom_call.1} parent=0
    #allocation2 [shape = 'u8[12288]{0}', space=vmem, size = 0x3000, scoped, tag = 'input window, operand 0, single buffered']
    #allocation3 [shape = 's32[1]{0}', space=sflag, size = 0x4, scoped, tag = 'scoped memory for tpu_custom_call.1']
    #allocation4 [shape = 's32[1]{0}', space=sflag, size = 0x4, scoped, tag = 'scoped memory for tpu_custom_call.1']
    #allocation5 [shape = 'u8[28672]{0}', space=vmem, size = 0x7000, scoped, tag = 'output window, operand 0, single buffered']
    %6 = vsyncpa [#allocation3], 0
    %7 = vsyncpa [#allocation4], 0
    // Predicated region
    $region2: #{tpu_custom_call.1} parent=1 // pred_check
      _
    $region3: #{tpu_custom_call.1} parent=1 // pred_check_branch
      %9 = sbr.rel (0) target = $region5
    $region4: #{tpu_custom_call.1} parent=1 // pred_region
      %s11 = ssub.s32 384, 384
      %12 = vsyncadd [#allocation3], %s11
      %s14 = sshll.u32 [#allocation2], 4
      %s15 = int_to_ptr.vmem [resolvable:$true] %s14
      %17 = dma.hbm_to_vmem [thread:$0]  %s0, 384, %s15, [#allocation3]
    $region5: #{tpu_custom_call.1} parent=1 // pred_fallthru
      _
    // Predicated region
    $region6: #{tpu_custom_call.1} parent=1 // pred_check
      _
    $region7: #{tpu_custom_call.1} parent=1 // pred_check_branch
      %19 = sbr.rel (0) target = $region9
    $region8: #{tpu_custom_call.1} parent=1 // pred_region
      %20 = dma.done [#allocation3], 384
    $region9: #{tpu_custom_call.1} parent=1 // pred_fallthru
      _
    %v21 = vld [vmem:[#allocation2] sm:$0xff]
    %v22 = vld [vmem:[#allocation2 + $0x8] sm:$0xff]
    %v23 = vld [vmem:[#allocation2 + $0x10] sm:$0xff]
    %25 = vrot.lane.b32.xlu0 %v22, 16
    %v26 = vpop.permute.xlu0 %25
    %28 = vrot.lane.b32.xlu0 %v22, 80
    %v29 = vpop.permute.xlu0 %28
    %32 = vrot.lane.b32.xlu0 %v23, 48
    %v33 = vpop.permute.xlu0 %32
    %35 = vrot.lane.b32.xlu0 %v23, 112
    %v36 = vpop.permute.xlu0 %35
    %39 = vrot.lane.b32.xlu0 %v21, 16
    %v40 = vpop.permute.xlu0 %39
    %42 = vrot.lane.b32.xlu0 %v21, 80
    %v43 = vpop.permute.xlu0 %42
    %45 = vrot.lane.b32.xlu0 %v21, 48
    %v46 = vpop.permute.xlu0 %45
    %48 = vrot.lane.b32.xlu0 %v21, 112
    %v49 = vpop.permute.xlu0 %48
    %51 = vrot.lane.b32.xlu0 %v22, 112
    %v52 = vpop.permute.xlu0 %51
    %vm54 = vcmask 130048
    %v55 = vsel %vm54, %v26, %v29
    %vm56 = vcmask 654336
    %v57 = vsel %vm56, %v55, %v26
    %vm58 = vcmask 785408
    %v59 = vsel %vm58, %v57, %v33
    %vm60 = vcmask 916480
    %v61 = vsel %vm60, %v59, %v36
    %vm62 = vcmask 392192
    %v63 = vsel %vm62, %v36, %v33
    %vm64 = vcmask 523264
    %v65 = vsel %vm64, %v63, %v40
    %v66 = vsel %vm56, %v65, %v43
    %v67 = vsel %vm54, %v43, %v40
    %vm68 = vcmask 261120
    %v69 = vsel %vm68, %v67, %v46
    %v70 = vsel %vm62, %v69, %v49
    %v71 = vsel %vm60, %v70, %v46
    %v72 = vsel %vm54, %v29, %v26
    %v73 = vsel %vm56, %v72, %v29
    %v74 = vsel %vm58, %v73, %v52
    %75 = vrot.lane.b32.xlu0 %v22, 64
    %v76 = vpop.permute.xlu0 %75
    %78 = vrot.lane.b32.xlu0 %v23, 32
    %v79 = vpop.permute.xlu0 %78
    %81 = vrot.lane.b32.xlu0 %v23, 96
    %v82 = vpop.permute.xlu0 %81
    %84 = vrot.lane.b32.xlu0 %v21, 64
    %v85 = vpop.permute.xlu0 %84
    %87 = vrot.lane.b32.xlu0 %v21, 32
    %v88 = vpop.permute.xlu0 %87
    %90 = vrot.lane.b32.xlu0 %v21, 96
    %v91 = vpop.permute.xlu0 %90
    %v93 = vsel %vm64, %v76, %v22
    %v94 = vsel %vm56, %v93, %v79
    %v95 = vsel %vm58, %v94, %v82
    %v96 = vsel %vm68, %v82, %v79
    %v97 = vsel %vm62, %v96, %v21
    %v98 = vsel %vm64, %v97, %v85
    %v99 = vsel %vm54, %v21, %v88
    %v100 = vsel %vm68, %v99, %v91
    %v101 = vsel %vm58, %v100, %v88
    %105 = vrot.lane.b32.xlu0 %v95, 112
    %v106 = vpop.permute.xlu0 %105
    %107 = vrot.lane.b32.xlu0 %v98, 112
    %v108 = vpop.permute.xlu0 %107
    %109 = vrot.lane.b32.xlu0 %v101, 112
    %v110 = vpop.permute.xlu0 %109
    %v111 = vsel %vm60, %v106, %v108
    %v112 = vsel %vm60, %v108, %v110
    %v117 = vsel %vm60, %v74, %v106
    %118 = vst [vmem:[#allocation5] sm:$0xff] %v61
    %119 = vst [vmem:[#allocation5 + $0x8] sm:$0xff] %v66
    %120 = vst [vmem:[#allocation5 + $0x10] sm:$0xff] %v71
    %121 = vst [vmem:[#allocation5 + $0x18] sm:$0xff] %v117
    %122 = vst [vmem:[#allocation5 + $0x20] sm:$0xff] %v111
    %123 = vst [vmem:[#allocation5 + $0x28] sm:$0xff] %v112
    %124 = vst.msk [vmem:[#allocation5 + $0x30] sm:$0xff] %vm58, %v110
    // Predicated region
    $region10: #{tpu_custom_call.1} parent=1 // pred_check
      _
    $region11: #{tpu_custom_call.1} parent=1 // pred_check_branch
      %126 = sbr.rel (0) target = $region13
    $region12: #{tpu_custom_call.1} parent=1 // pred_region
      %s128 = ssub.s32 896, 896
      %129 = vsyncadd [#allocation4], %s128
      %s131 = sshll.u32 [#allocation5], 4
      %s132 = int_to_ptr.vmem [resolvable:$true] %s131
      %134 = dma.vmem_to_hbm [thread:$0]  %s132, 896, %s1, [#allocation4]
    $region13: #{tpu_custom_call.1} parent=1 // pred_fallthru
      _
    // Predicated region
    $region14: #{tpu_custom_call.1} parent=1 // pred_check
      _
    $region15: #{tpu_custom_call.1} parent=1 // pred_check_branch
      %136 = sbr.rel (0) target = $region17
    $region16: #{tpu_custom_call.1} parent=1 // pred_region
      %137 = dma.done [#allocation4], 896
    $region17: #{tpu_custom_call.1} parent=1 // pred_fallthru
      _
    %138 = vsyncpa [#allocation3], 1
    %139 = vsyncpa [#allocation4], 1

</llo_original>
